<compile_context>
chip_gen: v7x
topology: tpu7x:2x2x1
jax: 0.10.0
libtpu: 0.0.40
codegen_flags: <defaults>
</compile_context>

<pallas_src>
import math
import jax
import jax.numpy as jnp
from jax.experimental import pallas as pl
from jax.experimental.pallas import tpu as pltpu

IMAGE_EMBEDDING_DIM = 512
TABULAR_EMBEDDING_DIM = 512
NUM_CLASSES = 14
NUM_LABELS = 3
BN_EPS = 1e-5


def _make_joint_kernel(n_fc_layers: int, use_bf16_matmul: bool):
    """Fused kernel: [FC -> BN(batch stats) -> ReLU] * n -> sigmoid -> classifier linear."""

    def kernel(*refs):
        # refs = (x, w_fc_0 ... w_fc_{n-1}, w_cls, b_cls, logits_out)
        x_ref = refs[0]
        fc_w_refs = refs[1:1 + n_fc_layers]
        wc_ref = refs[1 + n_fc_layers]
        bc_ref = refs[2 + n_fc_layers]
        out_ref = refs[3 + n_fc_layers]

        x = x_ref[...].astype(jnp.float32)            # (B, D0)
        inv_b = 1.0 / x.shape[0]                      # static

        def mxu_dot(a, w):
            if use_bf16_matmul:                       # v6e / v7x native bf16 MXU path
                a = a.astype(jnp.bfloat16)
                w = w.astype(jnp.bfloat16)
            return jnp.dot(a, w, preferred_element_type=jnp.float32)

        # ---- FullyConnectedNetwork (unrolled; everything stays in VMEM/vregs) ----
        for w_ref in fc_w_refs:
            y = mxu_dot(x, w_ref[...])                # (B, Dout); bias cancelled by BN
            # BatchNorm1d, training mode, one-pass stats.
            mean = jnp.sum(y, axis=0, keepdims=True) * inv_b
            mean_sq = jnp.sum(y * y, axis=0, keepdims=True) * inv_b
            var = mean_sq - mean * mean               # biased variance
            y = (y - mean) * jax.lax.rsqrt(var + BN_EPS)
            x = jnp.maximum(y, 0.0)                   # ReLU

        emb = jax.nn.sigmoid(x)                       # (B, TABULAR_EMBEDDING_DIM)

        # ---- ClassifierHead: Linear (bias kept: no BN here) ----
        logits = mxu_dot(emb, wc_ref[...]) + bc_ref[...]   # (B, num_classes*num_labels)
        out_ref[...] = logits

    return kernel


def joint_encoder_forward(x_tab, fc_weights, w_cls, b_cls,
                          num_classes=NUM_CLASSES, num_labels=NUM_LABELS,
                          use_bf16_matmul=False):
    """Tabular-only JointEncoder forward.

    x_tab      : (B, D0) float
    fc_weights : list of pre-transposed FC weights [(D0,D1), (D1,D2), ..., (Dk,512)]
    w_cls      : (512, num_classes*num_labels) pre-transposed classifier weight
    b_cls      : (num_classes*num_labels,) classifier bias
    returns    : {'logits': (B, C, L), 'prediction': (B, C, L) one-hot argmax}
    """
    x_tab = x_tab.astype(jnp.float32)
    B = x_tab.shape[0]
    assert B > 1, "training-mode BatchNorm needs batch size > 1 (var==0 otherwise)"
    dim_out = w_cls.shape[1]
    assert dim_out == num_classes * num_labels

    n_fc = len(fc_weights)
    n_inputs = 1 + n_fc + 2   # x, fc weights, classifier weight, classifier bias

    logits_flat = pl.pallas_call(
        _make_joint_kernel(n_fc, use_bf16_matmul),
        out_shape=jax.ShapeDtypeStruct((B, dim_out), jnp.float32),
        in_specs=[pl.BlockSpec(memory_space=pltpu.MemorySpace.VMEM)] * n_inputs,
        out_specs=pl.BlockSpec(memory_space=pltpu.MemorySpace.VMEM),
    )(x_tab, *fc_weights, w_cls, b_cls.reshape(1, dim_out))

    logits = logits_flat.reshape(B, num_classes, num_labels)
    # diagnosis(): one_hot(argmax) -- tiny, done in plain JAX outside the kernel.
    prediction = jax.nn.one_hot(jnp.argmax(logits, axis=-1), num_labels, dtype=jnp.int32)
    return {"logits": logits, "prediction": prediction}


def init_params(key, dim_input, hidden_dims,
                num_classes=NUM_CLASSES, num_labels=NUM_LABELS):
    """Deterministic init matching the reference module.

    FC weights: xavier_uniform (stored pre-transposed as (Din, Dout)); FC biases are
    zero in the reference AND algebraically cancelled by train-mode BN, so not created.
    Classifier head: uniform weight + zero bias (default-style Linear init).
    """
    dims = [dim_input] + list(hidden_dims) + [TABULAR_EMBEDDING_DIM]
    fc_weights = []
    for i in range(len(dims) - 1):
        fan_in, fan_out = dims[i], dims[i + 1]
        key, sub = jax.random.split(key)
        bound = math.sqrt(6.0 / (fan_in + fan_out))
        fc_weights.append(jax.random.uniform(sub, (fan_in, fan_out), jnp.float32,
                                             minval=-bound, maxval=bound))
    dim_out = num_classes * num_labels
    key, sub = jax.random.split(key)
    bound = 1.0 / math.sqrt(TABULAR_EMBEDDING_DIM)
    w_cls = jax.random.uniform(sub, (TABULAR_EMBEDDING_DIM, dim_out), jnp.float32,
                               minval=-bound, maxval=bound)
    b_cls = jnp.zeros((dim_out,), jnp.float32)
    return fc_weights, w_cls, b_cls


if __name__ == "__main__":
    key = jax.random.PRNGKey(0)
    key, kx = jax.random.split(key)

    batch = 8
    dim_input = 32
    hidden_dims = [64, 48]

    x_tab = jax.random.normal(kx, (batch, dim_input), jnp.float32)
    fc_weights, w_cls, b_cls = init_params(key, dim_input, hidden_dims)

    out = joint_encoder_forward(x_tab, fc_weights, w_cls, b_cls)
    out = jax.block_until_ready(out)

    logits = out["logits"]
    pred = out["prediction"]

    assert logits.shape == (batch, NUM_CLASSES, NUM_LABELS)
    assert pred.shape == (batch, NUM_CLASSES, NUM_LABELS)
    assert bool(jnp.all(jnp.isfinite(logits)))
    # prediction is a valid one-hot over the label axis
    assert bool(jnp.all(jnp.sum(pred, axis=-1) == 1))
    assert bool(jnp.all((pred == 0) | (pred == 1)))

    print("KERNEL_OK")
</pallas_src>

<mosaic_0001>
module attributes {stable_mosaic.version = 11 : i64} {
  func.func @kernel(%arg0: memref<8x32xf32, #tpu.memory_space<vmem>>, %arg1: memref<32x64xf32, #tpu.memory_space<vmem>>, %arg2: memref<64x48xf32, #tpu.memory_space<vmem>>, %arg3: memref<48x512xf32, #tpu.memory_space<vmem>>, %arg4: memref<512x42xf32, #tpu.memory_space<vmem>>, %arg5: memref<1x42xf32, #tpu.memory_space<vmem>>, %arg6: memref<8x42xf32, #tpu.memory_space<vmem>>) attributes {dimension_semantics = [], scalar_prefetch = 0 : i64, scratch_operands = 0 : i64, tpu.core_type = #tpu.core_type<tc>} {
    %c0 = arith.constant 0 : index
    %c0_0 = arith.constant 0 : index
    %0 = vector.load %arg0[%c0, %c0_0] : memref<8x32xf32, #tpu.memory_space<vmem>>, vector<8x32xf32>
    %c0_1 = arith.constant 0 : index
    %c0_2 = arith.constant 0 : index
    %1 = vector.load %arg1[%c0_1, %c0_2] : memref<32x64xf32, #tpu.memory_space<vmem>>, vector<32x64xf32>
    %cst = arith.constant dense<0.000000e+00> : vector<8x64xf32>
    %2 = tpu.matmul %0, %1, %cst {dimension_numbers = #tpu.dot_dimension_numbers<[1], [0], [0], [1], [0, 0, 1, 1], [], []>} : vector<8x32xf32>, vector<32x64xf32>, vector<8x64xf32> -> vector<8x64xf32>
    %cst_3 = arith.constant dense<0.000000e+00> : vector<64xf32>
    %3 = vector.multi_reduction <add>, %2, %cst_3 [0] : vector<8x64xf32> to vector<64xf32>
    %4 = vector.shape_cast %3 : vector<64xf32> to vector<1x64xf32>
    %cst_4 = arith.constant 1.250000e-01 : f32
    %5 = vector.broadcast %cst_4 : f32 to vector<1x64xf32>
    %6 = arith.mulf %4, %5 : vector<1x64xf32>
    %7 = arith.mulf %2, %2 : vector<8x64xf32>
    %cst_5 = arith.constant dense<0.000000e+00> : vector<64xf32>
    %8 = vector.multi_reduction <add>, %7, %cst_5 [0] : vector<8x64xf32> to vector<64xf32>
    %9 = vector.shape_cast %8 : vector<64xf32> to vector<1x64xf32>
    %cst_6 = arith.constant 1.250000e-01 : f32
    %10 = vector.broadcast %cst_6 : f32 to vector<1x64xf32>
    %11 = arith.mulf %9, %10 : vector<1x64xf32>
    %12 = arith.mulf %6, %6 : vector<1x64xf32>
    %13 = arith.subf %11, %12 : vector<1x64xf32>
    %14 = vector.broadcast %6 : vector<1x64xf32> to vector<8x64xf32>
    %15 = arith.subf %2, %14 : vector<8x64xf32>
    %cst_7 = arith.constant 9.99999974E-6 : f32
    %16 = vector.broadcast %cst_7 : f32 to vector<1x64xf32>
    %17 = arith.addf %13, %16 : vector<1x64xf32>
    %18 = math.rsqrt %17 : vector<1x64xf32>
    %19 = vector.broadcast %18 : vector<1x64xf32> to vector<8x64xf32>
    %20 = arith.mulf %15, %19 : vector<8x64xf32>
    %cst_8 = arith.constant 0.000000e+00 : f32
    %21 = vector.broadcast %cst_8 : f32 to vector<8x64xf32>
    %22 = arith.maximumf %20, %21 : vector<8x64xf32>
    %c0_9 = arith.constant 0 : index
    %c0_10 = arith.constant 0 : index
    %23 = vector.load %arg2[%c0_9, %c0_10] : memref<64x48xf32, #tpu.memory_space<vmem>>, vector<64x48xf32>
    %cst_11 = arith.constant dense<0.000000e+00> : vector<8x48xf32>
    %24 = tpu.matmul %22, %23, %cst_11 {dimension_numbers = #tpu.dot_dimension_numbers<[1], [0], [0], [1], [0, 0, 1, 1], [], []>} : vector<8x64xf32>, vector<64x48xf32>, vector<8x48xf32> -> vector<8x48xf32>
    %cst_12 = arith.constant dense<0.000000e+00> : vector<48xf32>
    %25 = vector.multi_reduction <add>, %24, %cst_12 [0] : vector<8x48xf32> to vector<48xf32>
    %26 = vector.shape_cast %25 : vector<48xf32> to vector<1x48xf32>
    %cst_13 = arith.constant 1.250000e-01 : f32
    %27 = vector.broadcast %cst_13 : f32 to vector<1x48xf32>
    %28 = arith.mulf %26, %27 : vector<1x48xf32>
    %29 = arith.mulf %24, %24 : vector<8x48xf32>
    %cst_14 = arith.constant dense<0.000000e+00> : vector<48xf32>
    %30 = vector.multi_reduction <add>, %29, %cst_14 [0] : vector<8x48xf32> to vector<48xf32>
    %31 = vector.shape_cast %30 : vector<48xf32> to vector<1x48xf32>
    %cst_15 = arith.constant 1.250000e-01 : f32
    %32 = vector.broadcast %cst_15 : f32 to vector<1x48xf32>
    %33 = arith.mulf %31, %32 : vector<1x48xf32>
    %34 = arith.mulf %28, %28 : vector<1x48xf32>
    %35 = arith.subf %33, %34 : vector<1x48xf32>
    %36 = vector.broadcast %28 : vector<1x48xf32> to vector<8x48xf32>
    %37 = arith.subf %24, %36 : vector<8x48xf32>
    %cst_16 = arith.constant 9.99999974E-6 : f32
    %38 = vector.broadcast %cst_16 : f32 to vector<1x48xf32>
    %39 = arith.addf %35, %38 : vector<1x48xf32>
    %40 = math.rsqrt %39 : vector<1x48xf32>
    %41 = vector.broadcast %40 : vector<1x48xf32> to vector<8x48xf32>
    %42 = arith.mulf %37, %41 : vector<8x48xf32>
    %cst_17 = arith.constant 0.000000e+00 : f32
    %43 = vector.broadcast %cst_17 : f32 to vector<8x48xf32>
    %44 = arith.maximumf %42, %43 : vector<8x48xf32>
    %c0_18 = arith.constant 0 : index
    %c0_19 = arith.constant 0 : index
    %45 = vector.load %arg3[%c0_18, %c0_19] : memref<48x512xf32, #tpu.memory_space<vmem>>, vector<48x512xf32>
    %cst_20 = arith.constant dense<0.000000e+00> : vector<8x512xf32>
    %46 = tpu.matmul %44, %45, %cst_20 {dimension_numbers = #tpu.dot_dimension_numbers<[1], [0], [0], [1], [0, 0, 1, 1], [], []>} : vector<8x48xf32>, vector<48x512xf32>, vector<8x512xf32> -> vector<8x512xf32>
    %cst_21 = arith.constant dense<0.000000e+00> : vector<512xf32>
    %47 = vector.multi_reduction <add>, %46, %cst_21 [0] : vector<8x512xf32> to vector<512xf32>
    %48 = vector.shape_cast %47 : vector<512xf32> to vector<1x512xf32>
    %cst_22 = arith.constant 1.250000e-01 : f32
    %49 = vector.broadcast %cst_22 : f32 to vector<1x512xf32>
    %50 = arith.mulf %48, %49 : vector<1x512xf32>
    %51 = arith.mulf %46, %46 : vector<8x512xf32>
    %cst_23 = arith.constant dense<0.000000e+00> : vector<512xf32>
    %52 = vector.multi_reduction <add>, %51, %cst_23 [0] : vector<8x512xf32> to vector<512xf32>
    %53 = vector.shape_cast %52 : vector<512xf32> to vector<1x512xf32>
    %cst_24 = arith.constant 1.250000e-01 : f32
    %54 = vector.broadcast %cst_24 : f32 to vector<1x512xf32>
    %55 = arith.mulf %53, %54 : vector<1x512xf32>
    %56 = arith.mulf %50, %50 : vector<1x512xf32>
    %57 = arith.subf %55, %56 : vector<1x512xf32>
    %58 = vector.broadcast %50 : vector<1x512xf32> to vector<8x512xf32>
    %59 = arith.subf %46, %58 : vector<8x512xf32>
    %cst_25 = arith.constant 9.99999974E-6 : f32
    %60 = vector.broadcast %cst_25 : f32 to vector<1x512xf32>
    %61 = arith.addf %57, %60 : vector<1x512xf32>
    %62 = math.rsqrt %61 : vector<1x512xf32>
    %63 = vector.broadcast %62 : vector<1x512xf32> to vector<8x512xf32>
    %64 = arith.mulf %59, %63 : vector<8x512xf32>
    %cst_26 = arith.constant 0.000000e+00 : f32
    %65 = vector.broadcast %cst_26 : f32 to vector<8x512xf32>
    %66 = arith.maximumf %64, %65 : vector<8x512xf32>
    %67 = arith.negf %66 : vector<8x512xf32>
    %68 = math.exp %67 : vector<8x512xf32>
    %cst_27 = arith.constant 1.000000e+00 : f32
    %69 = vector.broadcast %cst_27 : f32 to vector<8x512xf32>
    %70 = arith.addf %69, %68 : vector<8x512xf32>
    %71 = arith.divf %69, %70 : vector<8x512xf32>
    %c0_28 = arith.constant 0 : index
    %c0_29 = arith.constant 0 : index
    %72 = vector.load %arg4[%c0_28, %c0_29] : memref<512x42xf32, #tpu.memory_space<vmem>>, vector<512x42xf32>
    %cst_30 = arith.constant dense<0.000000e+00> : vector<8x42xf32>
    %73 = tpu.matmul %71, %72, %cst_30 {dimension_numbers = #tpu.dot_dimension_numbers<[1], [0], [0], [1], [0, 0, 1, 1], [], []>} : vector<8x512xf32>, vector<512x42xf32>, vector<8x42xf32> -> vector<8x42xf32>
    %c0_31 = arith.constant 0 : index
    %c0_32 = arith.constant 0 : index
    %74 = vector.load %arg5[%c0_31, %c0_32] : memref<1x42xf32, #tpu.memory_space<vmem>>, vector<1x42xf32>
    %75 = vector.broadcast %74 : vector<1x42xf32> to vector<8x42xf32>
    %76 = arith.addf %73, %75 : vector<8x42xf32>
    %c0_33 = arith.constant 0 : index
    %c0_34 = arith.constant 0 : index
    %77 = vector.load %arg6[%c0_33, %c0_34] : memref<8x42xf32, #tpu.memory_space<vmem>>, vector<8x42xf32>
    tpu.vector_store %arg6[%c0_33, %c0_34], %76 {strides = array<i32>} : memref<8x42xf32, #tpu.memory_space<vmem>>, vector<8x42xf32>,
    return
  }
}

</mosaic_0001>

<llo_original>
// kernel: tpu_custom_call.1
$region0: #{tpu_custom_call.1}
  #allocation0 [shape = 'u32[]', space=smem, size = 0x4, offset = 0x4, fixed_abs, tag = 'smem constant byte address 0x4 - core index']
  #allocation1 [shape = 'u32[144,128]{1,0:T(1,128)}', space=vmem, size = 0x12000, scoped, tag = 'internal scratch']
  %s0 = inlined_call_operand.vmem [shape: f32[8,32], index: 0, kind: input, shape index: {}]
  %s1 = inlined_call_operand.vmem [shape: f32[32,64], index: 1, kind: input, shape index: {}]
  %s2 = inlined_call_operand.vmem [shape: f32[64,48], index: 2, kind: input, shape index: {}]
  %s3 = inlined_call_operand.vmem [shape: f32[48,512], index: 3, kind: input, shape index: {}]
  %s4 = inlined_call_operand.vmem [shape: f32[512,42], index: 4, kind: input, shape index: {}]
  %s5 = inlined_call_operand.vmem [shape: f32[1,42], index: 5, kind: input, shape index: {}]
  %s6 = inlined_call_operand.hbm [shape: f32[8,42], index: 6, kind: output, shape index: {}]
  %s7 = sld [smem:[#allocation0]]
  $region34: #{tpu_custom_call.1} parent=0
    _
  %s9 = ssub.s32 1, %s7
  %s10 = scalar_select 0, %s9, %s7
  $region1: #{tpu_custom_call.1} parent=0
    #allocation2 [shape = 'u8[4096]{0}', space=vmem, size = 0x1000, scoped, tag = 'output window, operand 0, single buffered']
    #allocation3 [shape = 's32[1]{0}', space=sflag, size = 0x4, scoped, tag = 'scoped memory for tpu_custom_call.1']
    %11 = vsyncpa [#allocation3], 0
    // Predicated region
    $region2: #{tpu_custom_call.1} parent=1 // pred_check
      _
    $region3: #{tpu_custom_call.1} parent=1 // pred_check_branch
      %13 = sbr.rel (0) target = $region5
    $region4: #{tpu_custom_call.1} parent=1 // pred_region
      _
    $region5: #{tpu_custom_call.1} parent=1 // pred_fallthru
      _
    // Predicated region
    $region6: #{tpu_custom_call.1} parent=1 // pred_check
      _
    $region7: #{tpu_custom_call.1} parent=1 // pred_check_branch
      %15 = sbr.rel (0) target = $region9
    $region8: #{tpu_custom_call.1} parent=1 // pred_region
      _
    $region9: #{tpu_custom_call.1} parent=1 // pred_fallthru
      _
    // Predicated region
    $region10: #{tpu_custom_call.1} parent=1 // pred_check
      _
    $region11: #{tpu_custom_call.1} parent=1 // pred_check_branch
      %17 = sbr.rel (0) target = $region13
    $region12: #{tpu_custom_call.1} parent=1 // pred_region
      _
    $region13: #{tpu_custom_call.1} parent=1 // pred_fallthru
      _
    // Predicated region
    $region14: #{tpu_custom_call.1} parent=1 // pred_check
      _
    $region15: #{tpu_custom_call.1} parent=1 // pred_check_branch
      %19 = sbr.rel (0) target = $region17
    $region16: #{tpu_custom_call.1} parent=1 // pred_region
      _
    $region17: #{tpu_custom_call.1} parent=1 // pred_fallthru
      _
    // Predicated region
    $region18: #{tpu_custom_call.1} parent=1 // pred_check
      _
    $region19: #{tpu_custom_call.1} parent=1 // pred_check_branch
      %21 = sbr.rel (0) target = $region21
    $region20: #{tpu_custom_call.1} parent=1 // pred_region
      _
    $region21: #{tpu_custom_call.1} parent=1 // pred_fallthru
      _
    // Predicated region
    $region22: #{tpu_custom_call.1} parent=1 // pred_check
      _
    $region23: #{tpu_custom_call.1} parent=1 // pred_check_branch
      %23 = sbr.rel (0) target = $region25
    $region24: #{tpu_custom_call.1} parent=1 // pred_region
      _
    $region25: #{tpu_custom_call.1} parent=1 // pred_fallthru
      _
    %v24 = vld [vmem:[%s0] sm:$0xff]
    %v25 = vld [vmem:[%s1] sm:$0xff]
    %v26 = vld [vmem:[%s1 + $0x8] sm:$0xff]
    %v27 = vld [vmem:[%s1 + $0x10] sm:$0xff]
    %v28 = vld [vmem:[%s1 + $0x18] sm:$0xff]
    %vm29 = vcmask 261120
    %v31 = vsel %vm29, %v24, 0
    %33 = vmatprep.subr.mxu0 0.0
    %34 = vmatpush1.msra.mxu0 %v25
    %35 = vmatprep.subr.mxu0 0.0
    %36 = vmatpush1.msra.mxu0 %v26
    %37 = vmatprep.subr.mxu0 0.0
    %38 = vmatpush1.msra.mxu0 %v27
    %39 = vmatprep.subr.mxu0 0.0
    %40 = vmatpush1.msra.mxu0 %v28
    %41 = vmatprep.subr.mxu0 0.0
    %42 = vmatpush1.msra.mxu0 0.0
    %43 = vmatprep.subr.mxu0 0.0
    %44 = vmatpush1.msra.mxu0 0.0
    %45 = vmatprep.subr.mxu0 0.0
    %46 = vmatpush1.msra.mxu0 0.0
    %47 = vmatprep.subr.mxu0 0.0
    %48 = vmatpush1.msra.mxu0 0.0
    %49 = vmatprep.subr.mxu0 0.0
    %50 = vmatpush1.msra.mxu0 0.0
    %51 = vmatprep.subr.mxu0 0.0
    %52 = vmatpush1.msra.mxu0 0.0
    %53 = vmatprep.subr.mxu0 0.0
    %54 = vmatpush1.msra.mxu0 0.0
    %55 = vmatprep.subr.mxu0 0.0
    %56 = vmatpush1.msra.mxu0 0.0
    %57 = vmatprep.subr.mxu0 0.0
    %58 = vmatpush1.msra.mxu0 0.0
    %59 = vmatprep.subr.mxu0 0.0
    %60 = vmatpush1.msra.mxu0 0.0
    %61 = vmatprep.subr.mxu0 0.0
    %62 = vmatpush1.msra.mxu0 0.0
    %63 = vmatprep.subr.mxu0 0.0
    %64 = vmatpush1.msra.mxu0 0.0
    %65 = vmatprep.subr.mxu0 0.0
    %66 = vmatpush1.msra.mxu0 0.0
    %67 = vmatprep.subr.mxu0 0.0
    %68 = vmatpush1.msra.mxu0 0.0
    %69 = vmatprep.subr.mxu0 0.0
    %70 = vmatpush1.msra.mxu0 0.0
    %71 = vmatprep.subr.mxu0 0.0
    %72 = vmatpush1.msra.mxu0 0.0
    %73 = vmatprep.subr.mxu0 0.0
    %74 = vmatpush1.msra.mxu0 0.0
    %75 = vmatprep.subr.mxu0 0.0
    %76 = vmatpush1.msra.mxu0 0.0
    %77 = vmatprep.subr.mxu0 0.0
    %78 = vmatpush1.msra.mxu0 0.0
    %79 = vmatprep.subr.mxu0 0.0
    %80 = vmatpush1.msra.mxu0 0.0
    %81 = vmatprep.subr.mxu0 0.0
    %82 = vmatpush1.msra.mxu0 0.0
    %83 = vmatprep.subr.mxu0 0.0
    %84 = vmatpush1.msra.mxu0 0.0
    %85 = vmatprep.subr.mxu0 0.0
    %86 = vmatpush1.msra.mxu0 0.0
    %87 = vmatprep.subr.mxu0 0.0
    %88 = vmatpush1.msra.mxu0 0.0
    %89 = vmatprep.subr.mxu0 0.0
    %90 = vmatpush1.msra.mxu0 0.0
    %91 = vmatprep.subr.mxu0 0.0
    %92 = vmatpush1.msra.mxu0 0.0
    %93 = vmatprep.subr.mxu0 0.0
    %94 = vmatpush1.msra.mxu0 0.0
    %95 = vmatprep.subr.mxu0 0.0
    %96 = vmatpush1.msra.mxu0 0.0
    %97 = vmatprep.mubr.f32.mxu0 0.0
    %98 = vmatmul.mubr.f32.gmra.mrb[0].mxu0 %v31
    %v99 = vpop.f32.mrb[0].mxu0
    %v100 = vadd.f32 0.0, %v99
    %v101 = vpop.f32.mrb[0].mxu0
    %102 = vdwg.mxu0
    %vm103 = vcmask 523264
    %v104 = vsel %vm103, %v100, 0.0
    %v105 = vrot.slane %v104, 4
    %v106 = vadd.f32 %v104, %v105
    %v107 = vrot.slane %v106, 2
    %v108 = vadd.f32 %v106, %v107
    %v109 = vrot.slane %v108, 1
    %v110 = vadd.f32 %v108, %v109
    %v111 = vmul.f32 %v110, 0.125
    %v112 = vmul.f32 %v100, %v100
    %v113 = vsel %vm103, %v112, 0.0
    %v114 = vrot.slane %v113, 4
    %v115 = vadd.f32 %v113, %v114
    %v116 = vrot.slane %v115, 2
    %v117 = vadd.f32 %v115, %v116
    %v118 = vrot.slane %v117, 1
    %v119 = vadd.f32 %v117, %v118
    %v120 = vmul.f32 %v119, 0.125
    %v121 = vmul.f32 %v111, %v111
    %v122 = vsub.f32 %v120, %v121
    %v123 = vsub.f32 %v100, %v111
    %v124 = vadd.f32 %v122, 1e-05
    %v125 = vrsqrt.pop %v124
    %v126 = vmul.f32 %v123, %v125
    %v127 = vmax.f32 %v126, 0.0
    %v128 = vld [vmem:[%s2] sm:$0xff]
    %v129 = vld [vmem:[%s2 + $0x8] sm:$0xff]
    %v130 = vld [vmem:[%s2 + $0x10] sm:$0xff]
    %v131 = vld [vmem:[%s2 + $0x18] sm:$0xff]
    %v132 = vld [vmem:[%s2 + $0x20] sm:$0xff]
    %v133 = vld [vmem:[%s2 + $0x28] sm:$0xff]
    %v134 = vld [vmem:[%s2 + $0x30] sm:$0xff]
    %v135 = vld [vmem:[%s2 + $0x38] sm:$0xff]
    %v137 = vsel %vm103, %v127, 0
    %139 = vmatprep.subr.mxu0 0.0
    %140 = vmatpush1.msra.mxu0 %v128
    %141 = vmatprep.subr.mxu0 0.0
    %142 = vmatpush1.msra.mxu0 %v129
    %143 = vmatprep.subr.mxu0 0.0
    %144 = vmatpush1.msra.mxu0 %v130
    %145 = vmatprep.subr.mxu0 0.0
    %146 = vmatpush1.msra.mxu0 %v131
    %147 = vmatprep.subr.mxu0 0.0
    %148 = vmatpush1.msra.mxu0 %v132
    %149 = vmatprep.subr.mxu0 0.0
    %150 = vmatpush1.msra.mxu0 %v133
    %151 = vmatprep.subr.mxu0 0.0
    %152 = vmatpush1.msra.mxu0 %v134
    %153 = vmatprep.subr.mxu0 0.0
    %154 = vmatpush1.msra.mxu0 %v135
    %155 = vmatprep.subr.mxu0 0.0
    %156 = vmatpush1.msra.mxu0 0.0
    %157 = vmatprep.subr.mxu0 0.0
    %158 = vmatpush1.msra.mxu0 0.0
    %159 = vmatprep.subr.mxu0 0.0
    %160 = vmatpush1.msra.mxu0 0.0
    %161 = vmatprep.subr.mxu0 0.0
    %162 = vmatpush1.msra.mxu0 0.0
    %163 = vmatprep.subr.mxu0 0.0
    %164 = vmatpush1.msra.mxu0 0.0
    %165 = vmatprep.subr.mxu0 0.0
    %166 = vmatpush1.msra.mxu0 0.0
    %167 = vmatprep.subr.mxu0 0.0
    %168 = vmatpush1.msra.mxu0 0.0
    %169 = vmatprep.subr.mxu0 0.0
    %170 = vmatpush1.msra.mxu0 0.0
    %171 = vmatprep.subr.mxu0 0.0
    %172 = vmatpush1.msra.mxu0 0.0
    %173 = vmatprep.subr.mxu0 0.0
    %174 = vmatpush1.msra.mxu0 0.0
    %175 = vmatprep.subr.mxu0 0.0
    %176 = vmatpush1.msra.mxu0 0.0
    %177 = vmatprep.subr.mxu0 0.0
    %178 = vmatpush1.msra.mxu0 0.0
    %179 = vmatprep.subr.mxu0 0.0
    %180 = vmatpush1.msra.mxu0 0.0
    %181 = vmatprep.subr.mxu0 0.0
    %182 = vmatpush1.msra.mxu0 0.0
    %183 = vmatprep.subr.mxu0 0.0
    %184 = vmatpush1.msra.mxu0 0.0
    %185 = vmatprep.subr.mxu0 0.0
    %186 = vmatpush1.msra.mxu0 0.0
    %187 = vmatprep.subr.mxu0 0.0
    %188 = vmatpush1.msra.mxu0 0.0
    %189 = vmatprep.subr.mxu0 0.0
    %190 = vmatpush1.msra.mxu0 0.0
    %191 = vmatprep.subr.mxu0 0.0
    %192 = vmatpush1.msra.mxu0 0.0
    %193 = vmatprep.subr.mxu0 0.0
    %194 = vmatpush1.msra.mxu0 0.0
    %195 = vmatprep.subr.mxu0 0.0
    %196 = vmatpush1.msra.mxu0 0.0
    %197 = vmatprep.subr.mxu0 0.0
    %198 = vmatpush1.msra.mxu0 0.0
    %199 = vmatprep.subr.mxu0 0.0
    %200 = vmatpush1.msra.mxu0 0.0
    %201 = vmatprep.subr.mxu0 0.0
    %202 = vmatpush1.msra.mxu0 0.0
    %203 = vmatprep.mubr.f32.mxu0 0.0
    %204 = vmatmul.mubr.f32.gmra.mrb[0].mxu0 %v137
    %v205 = vpop.f32.mrb[0].mxu0
    %v206 = vadd.f32 0.0, %v205
    %v207 = vpop.f32.mrb[0].mxu0
    %208 = vdwg.mxu0
    %vm209 = vcmask 392192
    %v210 = vsel %vm209, %v206, 0.0
    %v211 = vrot.slane %v210, 4
    %v212 = vadd.f32 %v210, %v211
    %v213 = vrot.slane %v212, 2
    %v214 = vadd.f32 %v212, %v213
    %v215 = vrot.slane %v214, 1
    %v216 = vadd.f32 %v214, %v215
    %v217 = vmul.f32 %v216, 0.125
    %v218 = vmul.f32 %v206, %v206
    %v219 = vsel %vm209, %v218, 0.0
    %v220 = vrot.slane %v219, 4
    %v221 = vadd.f32 %v219, %v220
    %v222 = vrot.slane %v221, 2
    %v223 = vadd.f32 %v221, %v222
    %v224 = vrot.slane %v223, 1
    %v225 = vadd.f32 %v223, %v224
    %v226 = vmul.f32 %v225, 0.125
    %v227 = vmul.f32 %v217, %v217
    %v228 = vsub.f32 %v226, %v227
    %v229 = vsub.f32 %v206, %v217
    %v230 = vadd.f32 %v228, 1e-05
    %v231 = vrsqrt.pop %v230
    %v232 = vmul.f32 %v229, %v231
    %v233 = vmax.f32 %v232, 0.0
    %v234 = vld [vmem:[%s3] sm:$0xff]
    %v235 = vld [vmem:[%s3 + $0x8] sm:$0xff]
    %v236 = vld [vmem:[%s3 + $0x10] sm:$0xff]
    %v237 = vld [vmem:[%s3 + $0x18] sm:$0xff]
    %v238 = vld [vmem:[%s3 + $0x20] sm:$0xff]
    %v239 = vld [vmem:[%s3 + $0x28] sm:$0xff]
    %v240 = vld [vmem:[%s3 + $0x30] sm:$0xff]
    %v241 = vld [vmem:[%s3 + $0x38] sm:$0xff]
    %v242 = vld [vmem:[%s3 + $0x40] sm:$0xff]
    %v243 = vld [vmem:[%s3 + $0x48] sm:$0xff]
    %v244 = vld [vmem:[%s3 + $0x50] sm:$0xff]
    %v245 = vld [vmem:[%s3 + $0x58] sm:$0xff]
    %v246 = vld [vmem:[%s3 + $0x60] sm:$0xff]
    %v247 = vld [vmem:[%s3 + $0x68] sm:$0xff]
    %v248 = vld [vmem:[%s3 + $0x70] sm:$0xff]
    %v249 = vld [vmem:[%s3 + $0x78] sm:$0xff]
    %v250 = vld [vmem:[%s3 + $0x80] sm:$0xff]
    %v251 = vld [vmem:[%s3 + $0x88] sm:$0xff]
    %v252 = vld [vmem:[%s3 + $0x90] sm:$0xff]
    %v253 = vld [vmem:[%s3 + $0x98] sm:$0xff]
    %v254 = vld [vmem:[%s3 + $0xa0] sm:$0xff]
    %v255 = vld [vmem:[%s3 + $0xa8] sm:$0xff]
    %v256 = vld [vmem:[%s3 + $0xb0] sm:$0xff]
    %v257 = vld [vmem:[%s3 + $0xb8] sm:$0xff]
    %v259 = vsel %vm209, %v233, 0
    %261 = vmatprep.subr.mxu0 %v235
    %262 = vmatpush1.msra.mxu0 %v234
    %263 = vmatprep.subr.mxu0 %v239
    %264 = vmatpush1.msra.mxu0 %v238
    %265 = vmatprep.subr.mxu0 %v243
    %266 = vmatpush1.msra.mxu0 %v242
    %267 = vmatprep.subr.mxu0 %v247
    %268 = vmatpush1.msra.mxu0 %v246
    %269 = vmatprep.subr.mxu0 %v251
    %270 = vmatpush1.msra.mxu0 %v250
    %271 = vmatprep.subr.mxu0 %v255
    %272 = vmatpush1.msra.mxu0 %v254
    %273 = vmatprep.subr.mxu0 0.0
    %274 = vmatpush1.msra.mxu0 0.0
    %275 = vmatprep.subr.mxu0 0.0
    %276 = vmatpush1.msra.mxu0 0.0
    %277 = vmatprep.subr.mxu0 0.0
    %278 = vmatpush1.msra.mxu0 0.0
    %279 = vmatprep.subr.mxu0 0.0
    %280 = vmatpush1.msra.mxu0 0.0
    %281 = vmatprep.subr.mxu0 0.0
    %282 = vmatpush1.msra.mxu0 0.0
    %283 = vmatprep.subr.mxu0 0.0
    %284 = vmatpush1.msra.mxu0 0.0
    %285 = vmatprep.subr.mxu0 0.0
    %286 = vmatpush1.msra.mxu0 0.0
    %287 = vmatprep.subr.mxu0 0.0
    %288 = vmatpush1.msra.mxu0 0.0
    %289 = vmatprep.subr.mxu0 0.0
    %290 = vmatpush1.msra.mxu0 0.0
    %291 = vmatprep.subr.mxu0 0.0
    %292 = vmatpush1.msra.mxu0 0.0
    %293 = vmatprep.subr.mxu0 0.0
    %294 = vmatpush1.msra.mxu0 0.0
    %295 = vmatprep.subr.mxu0 0.0
    %296 = vmatpush1.msra.mxu0 0.0
    %297 = vmatprep.subr.mxu0 0.0
    %298 = vmatpush1.msra.mxu0 0.0
    %299 = vmatprep.subr.mxu0 0.0
    %300 = vmatpush1.msra.mxu0 0.0
    %301 = vmatprep.subr.mxu0 0.0
    %302 = vmatpush1.msra.mxu0 0.0
    %303 = vmatprep.subr.mxu0 0.0
    %304 = vmatpush1.msra.mxu0 0.0
    %305 = vmatprep.subr.mxu0 0.0
    %306 = vmatpush1.msra.mxu0 0.0
    %307 = vmatprep.subr.mxu0 0.0
    %308 = vmatpush1.msra.mxu0 0.0
    %309 = vmatprep.subr.mxu0 0.0
    %310 = vmatpush1.msra.mxu0 0.0
    %311 = vmatprep.subr.mxu0 0.0
    %312 = vmatpush1.msra.mxu0 0.0
    %313 = vmatprep.subr.mxu0 0.0
    %314 = vmatpush1.msra.mxu0 0.0
    %315 = vmatprep.subr.mxu0 0.0
    %316 = vmatpush1.msra.mxu0 0.0
    %317 = vmatprep.subr.mxu0 0.0
    %318 = vmatpush1.msra.mxu0 0.0
    %319 = vmatprep.subr.mxu0 0.0
    %320 = vmatpush1.msra.mxu0 0.0
    %321 = vmatprep.subr.mxu0 0.0
    %322 = vmatpush1.msra.mxu0 0.0
    %323 = vmatprep.subr.mxu0 0.0
    %324 = vmatpush1.msra.mxu0 0.0
    %325 = vmatprep.mubr.f32.mxu0 0.0
    %326 = vmatmul.mubr.f32.gmra.mrb[0].mxu0 %v259
    %v327 = vpop.f32.mrb[0].mxu0
    %v328 = vadd.f32 0.0, %v327
    %v329 = vpop.f32.mrb[0].mxu0
    %v330 = vadd.f32 0.0, %v329
    %331 = vdwg.mxu0
    %332 = vmatprep.subr.mxu0 %v237
    %333 = vmatpush1.msra.mxu0 %v236
    %334 = vmatprep.subr.mxu0 %v241
    %335 = vmatpush1.msra.mxu0 %v240
    %336 = vmatprep.subr.mxu0 %v245
    %337 = vmatpush1.msra.mxu0 %v244
    %338 = vmatprep.subr.mxu0 %v249
    %339 = vmatpush1.msra.mxu0 %v248
    %340 = vmatprep.subr.mxu0 %v253
    %341 = vmatpush1.msra.mxu0 %v252
    %342 = vmatprep.subr.mxu0 %v257
    %343 = vmatpush1.msra.mxu0 %v256
    %344 = vmatprep.subr.mxu0 0.0
    %345 = vmatpush1.msra.mxu0 0.0
    %346 = vmatprep.subr.mxu0 0.0
    %347 = vmatpush1.msra.mxu0 0.0
    %348 = vmatprep.subr.mxu0 0.0
    %349 = vmatpush1.msra.mxu0 0.0
    %350 = vmatprep.subr.mxu0 0.0
    %351 = vmatpush1.msra.mxu0 0.0
    %352 = vmatprep.subr.mxu0 0.0
    %353 = vmatpush1.msra.mxu0 0.0
    %354 = vmatprep.subr.mxu0 0.0
    %355 = vmatpush1.msra.mxu0 0.0
    %356 = vmatprep.subr.mxu0 0.0
    %357 = vmatpush1.msra.mxu0 0.0
    %358 = vmatprep.subr.mxu0 0.0
    %359 = vmatpush1.msra.mxu0 0.0
    %360 = vmatprep.subr.mxu0 0.0
    %361 = vmatpush1.msra.mxu0 0.0
    %362 = vmatprep.subr.mxu0 0.0
    %363 = vmatpush1.msra.mxu0 0.0
    %364 = vmatprep.subr.mxu0 0.0
    %365 = vmatpush1.msra.mxu0 0.0
    %366 = vmatprep.subr.mxu0 0.0
    %367 = vmatpush1.msra.mxu0 0.0
    %368 = vmatprep.subr.mxu0 0.0
    %369 = vmatpush1.msra.mxu0 0.0
    %370 = vmatprep.subr.mxu0 0.0
    %371 = vmatpush1.msra.mxu0 0.0
    %372 = vmatprep.subr.mxu0 0.0
    %373 = vmatpush1.msra.mxu0 0.0
    %374 = vmatprep.subr.mxu0 0.0
    %375 = vmatpush1.msra.mxu0 0.0
    %376 = vmatprep.subr.mxu0 0.0
    %377 = vmatpush1.msra.mxu0 0.0
    %378 = vmatprep.subr.mxu0 0.0
    %379 = vmatpush1.msra.mxu0 0.0
    %380 = vmatprep.subr.mxu0 0.0
    %381 = vmatpush1.msra.mxu0 0.0
    %382 = vmatprep.subr.mxu0 0.0
    %383 = vmatpush1.msra.mxu0 0.0
    %384 = vmatprep.subr.mxu0 0.0
    %385 = vmatpush1.msra.mxu0 0.0
    %386 = vmatprep.subr.mxu0 0.0
    %387 = vmatpush1.msra.mxu0 0.0
    %388 = vmatprep.subr.mxu0 0.0
    %389 = vmatpush1.msra.mxu0 0.0
    %390 = vmatprep.subr.mxu0 0.0
    %391 = vmatpush1.msra.mxu0 0.0
    %392 = vmatprep.subr.mxu0 0.0
    %393 = vmatpush1.msra.mxu0 0.0
    %394 = vmatprep.subr.mxu0 0.0
    %395 = vmatpush1.msra.mxu0 0.0
    %396 = vmatprep.mubr.f32.mxu0 0.0
    %397 = vmatmul.mubr.f32.gmra.mrb[0].mxu0 %v259
    %v398 = vpop.f32.mrb[0].mxu0
    %v399 = vadd.f32 0.0, %v398
    %v400 = vpop.f32.mrb[0].mxu0
    %v401 = vadd.f32 0.0, %v400
    %402 = vdwg.mxu0
    %v403 = vrot.slane %v328, 4
    %v404 = vadd.f32 %v328, %v403
    %v405 = vrot.slane %v404, 2
    %v406 = vadd.f32 %v404, %v405
    %v407 = vrot.slane %v406, 1
    %v408 = vadd.f32 %v406, %v407
    %v409 = vrot.slane %v330, 4
    %v410 = vadd.f32 %v330, %v409
    %v411 = vrot.slane %v410, 2
    %v412 = vadd.f32 %v410, %v411
    %v413 = vrot.slane %v412, 1
    %v414 = vadd.f32 %v412, %v413
    %v415 = vrot.slane %v399, 4
    %v416 = vadd.f32 %v399, %v415
    %v417 = vrot.slane %v416, 2
    %v418 = vadd.f32 %v416, %v417
    %v419 = vrot.slane %v418, 1
    %v420 = vadd.f32 %v418, %v419
    %v421 = vrot.slane %v401, 4
    %v422 = vadd.f32 %v401, %v421
    %v423 = vrot.slane %v422, 2
    %v424 = vadd.f32 %v422, %v423
    %v425 = vrot.slane %v424, 1
    %v426 = vadd.f32 %v424, %v425
    %v427 = vmul.f32 %v408, 0.125
    %v428 = vmul.f32 %v414, 0.125
    %v429 = vmul.f32 %v420, 0.125
    %v430 = vmul.f32 %v426, 0.125
    %v431 = vmul.f32 %v328, %v328
    %v432 = vmul.f32 %v330, %v330
    %v433 = vmul.f32 %v399, %v399
    %v434 = vmul.f32 %v401, %v401
    %v435 = vrot.slane %v431, 4
    %v436 = vadd.f32 %v431, %v435
    %v437 = vrot.slane %v436, 2
    %v438 = vadd.f32 %v436, %v437
    %v439 = vrot.slane %v438, 1
    %v440 = vadd.f32 %v438, %v439
    %v441 = vrot.slane %v432, 4
    %v442 = vadd.f32 %v432, %v441
    %v443 = vrot.slane %v442, 2
    %v444 = vadd.f32 %v442, %v443
    %v445 = vrot.slane %v444, 1
    %v446 = vadd.f32 %v444, %v445
    %v447 = vrot.slane %v433, 4
    %v448 = vadd.f32 %v433, %v447
    %v449 = vrot.slane %v448, 2
    %v450 = vadd.f32 %v448, %v449
    %v451 = vrot.slane %v450, 1
    %v452 = vadd.f32 %v450, %v451
    %v453 = vrot.slane %v434, 4
    %v454 = vadd.f32 %v434, %v453
    %v455 = vrot.slane %v454, 2
    %v456 = vadd.f32 %v454, %v455
    %v457 = vrot.slane %v456, 1
    %v458 = vadd.f32 %v456, %v457
    %v459 = vmul.f32 %v440, 0.125
    %v460 = vmul.f32 %v446, 0.125
    %v461 = vmul.f32 %v452, 0.125
    %v462 = vmul.f32 %v458, 0.125
    %v463 = vmul.f32 %v427, %v427
    %v464 = vmul.f32 %v428, %v428
    %v465 = vmul.f32 %v429, %v429
    %v466 = vmul.f32 %v430, %v430
    %v467 = vsub.f32 %v459, %v463
    %v468 = vsub.f32 %v460, %v464
    %v469 = vsub.f32 %v461, %v465
    %v470 = vsub.f32 %v462, %v466
    %v471 = vsub.f32 %v328, %v427
    %v472 = vsub.f32 %v330, %v428
    %v473 = vsub.f32 %v399, %v429
    %v474 = vsub.f32 %v401, %v430
    %v475 = vadd.f32 %v467, 1e-05
    %v476 = vadd.f32 %v468, 1e-05
    %v477 = vadd.f32 %v469, 1e-05
    %v478 = vadd.f32 %v470, 1e-05
    %v479 = vrsqrt.pop %v475
    %v480 = vrsqrt.pop %v476
    %v481 = vrsqrt.pop %v477
    %v482 = vrsqrt.pop %v478
    %v483 = vmul.f32 %v471, %v479
    %v484 = vmul.f32 %v472, %v480
    %v485 = vmul.f32 %v473, %v481
    %v486 = vmul.f32 %v474, %v482
    %v487 = vmax.f32 %v483, 0.0
    %v488 = vmax.f32 %v484, 0.0
    %v489 = vmax.f32 %v485, 0.0
    %v490 = vmax.f32 %v486, 0.0
    %v491 = vxor.u32 %v487, 2147483648
    %v492 = vxor.u32 %v488, 2147483648
    %v493 = vxor.u32 %v489, 2147483648
    %v494 = vxor.u32 %v490, 2147483648
    %v495 = vmul.f32 %v491, 1.442695
    %v496 = vpow.pop %v495
    %v497 = vmul.f32 %v492, 1.442695
    %v498 = vpow.pop %v497
    %v499 = vmul.f32 %v493, 1.442695
    %v500 = vpow.pop %v499
    %v501 = vmul.f32 %v494, 1.442695
    %v502 = vpow.pop %v501
    %v503 = vadd.f32 %v496, 1.0
    %v504 = vadd.f32 %v498, 1.0
    %v505 = vadd.f32 %v500, 1.0
    %v506 = vadd.f32 %v502, 1.0
    %v507 = vrcp.pop %v503
    %v508 = vmul.f32 1.0, %v507
    %v509 = vrcp.pop %v504
    %v510 = vmul.f32 1.0, %v509
    %v511 = vrcp.pop %v505
    %v512 = vmul.f32 1.0, %v511
    %v513 = vrcp.pop %v506
    %v514 = vmul.f32 1.0, %v513
    %v515 = vld [vmem:[%s4] sm:$0xff]
    %v516 = vld [vmem:[%s4 + $0x8] sm:$0xff]
    %v517 = vld [vmem:[%s4 + $0x10] sm:$0xff]
    %v518 = vld [vmem:[%s4 + $0x18] sm:$0xff]
    %v519 = vld [vmem:[%s4 + $0x20] sm:$0xff]
    %v520 = vld [vmem:[%s4 + $0x28] sm:$0xff]
    %v521 = vld [vmem:[%s4 + $0x30] sm:$0xff]
    %v522 = vld [vmem:[%s4 + $0x38] sm:$0xff]
    %v523 = vld [vmem:[%s4 + $0x40] sm:$0xff]
    %v524 = vld [vmem:[%s4 + $0x48] sm:$0xff]
    %v525 = vld [vmem:[%s4 + $0x50] sm:$0xff]
    %v526 = vld [vmem:[%s4 + $0x58] sm:$0xff]
    %v527 = vld [vmem:[%s4 + $0x60] sm:$0xff]
    %v528 = vld [vmem:[%s4 + $0x68] sm:$0xff]
    %v529 = vld [vmem:[%s4 + $0x70] sm:$0xff]
    %v530 = vld [vmem:[%s4 + $0x78] sm:$0xff]
    %v531 = vld [vmem:[%s4 + $0x80] sm:$0xff]
    %v532 = vld [vmem:[%s4 + $0x88] sm:$0xff]
    %v533 = vld [vmem:[%s4 + $0x90] sm:$0xff]
    %v534 = vld [vmem:[%s4 + $0x98] sm:$0xff]
    %v535 = vld [vmem:[%s4 + $0xa0] sm:$0xff]
    %v536 = vld [vmem:[%s4 + $0xa8] sm:$0xff]
    %v537 = vld [vmem:[%s4 + $0xb0] sm:$0xff]
    %v538 = vld [vmem:[%s4 + $0xb8] sm:$0xff]
    %v539 = vld [vmem:[%s4 + $0xc0] sm:$0xff]
    %v540 = vld [vmem:[%s4 + $0xc8] sm:$0xff]
    %v541 = vld [vmem:[%s4 + $0xd0] sm:$0xff]
    %v542 = vld [vmem:[%s4 + $0xd8] sm:$0xff]
    %v543 = vld [vmem:[%s4 + $0xe0] sm:$0xff]
    %v544 = vld [vmem:[%s4 + $0xe8] sm:$0xff]
    %v545 = vld [vmem:[%s4 + $0xf0] sm:$0xff]
    %v546 = vld [vmem:[%s4 + $0xf8] sm:$0xff]
    %v547 = vld [vmem:[%s4 + $0x100] sm:$0xff]
    %v548 = vld [vmem:[%s4 + $0x108] sm:$0xff]
    %v549 = vld [vmem:[%s4 + $0x110] sm:$0xff]
    %v550 = vld [vmem:[%s4 + $0x118] sm:$0xff]
    %v551 = vld [vmem:[%s4 + $0x120] sm:$0xff]
    %v552 = vld [vmem:[%s4 + $0x128] sm:$0xff]
    %v553 = vld [vmem:[%s4 + $0x130] sm:$0xff]
    %v554 = vld [vmem:[%s4 + $0x138] sm:$0xff]
    %v555 = vld [vmem:[%s4 + $0x140] sm:$0xff]
    %v556 = vld [vmem:[%s4 + $0x148] sm:$0xff]
    %v557 = vld [vmem:[%s4 + $0x150] sm:$0xff]
    %v558 = vld [vmem:[%s4 + $0x158] sm:$0xff]
    %v559 = vld [vmem:[%s4 + $0x160] sm:$0xff]
    %v560 = vld [vmem:[%s4 + $0x168] sm:$0xff]
    %v561 = vld [vmem:[%s4 + $0x170] sm:$0xff]
    %v562 = vld [vmem:[%s4 + $0x178] sm:$0xff]
    %v563 = vld [vmem:[%s4 + $0x180] sm:$0xff]
    %v564 = vld [vmem:[%s4 + $0x188] sm:$0xff]
    %v565 = vld [vmem:[%s4 + $0x190] sm:$0xff]
    %v566 = vld [vmem:[%s4 + $0x198] sm:$0xff]
    %v567 = vld [vmem:[%s4 + $0x1a0] sm:$0xff]
    %v568 = vld [vmem:[%s4 + $0x1a8] sm:$0xff]
    %v569 = vld [vmem:[%s4 + $0x1b0] sm:$0xff]
    %v570 = vld [vmem:[%s4 + $0x1b8] sm:$0xff]
    %v571 = vld [vmem:[%s4 + $0x1c0] sm:$0xff]
    %v572 = vld [vmem:[%s4 + $0x1c8] sm:$0xff]
    %v573 = vld [vmem:[%s4 + $0x1d0] sm:$0xff]
    %v574 = vld [vmem:[%s4 + $0x1d8] sm:$0xff]
    %v575 = vld [vmem:[%s4 + $0x1e0] sm:$0xff]
    %v576 = vld [vmem:[%s4 + $0x1e8] sm:$0xff]
    %v577 = vld [vmem:[%s4 + $0x1f0] sm:$0xff]
    %v578 = vld [vmem:[%s4 + $0x1f8] sm:$0xff]
    %v579 = vld [vmem:[%s5] sm:$0x1]
    %v581 = vlaneseq
    %v582 = vshrl.u32 %v581, 7
    %v583 = vsub.s32 0, %v582
    %v584 = vrot.slane %v579, %v583
    %586 = vmatprep.subr.mxu0 0.0
    %587 = vmatpush1.msra.mxu0 %v515
    %588 = vmatprep.subr.mxu0 0.0
    %589 = vmatpush1.msra.mxu0 %v516
    %590 = vmatprep.subr.mxu0 0.0
    %591 = vmatpush1.msra.mxu0 %v517
    %592 = vmatprep.subr.mxu0 0.0
    %593 = vmatpush1.msra.mxu0 %v518
    %594 = vmatprep.subr.mxu0 0.0
    %595 = vmatpush1.msra.mxu0 %v519
    %596 = vmatprep.subr.mxu0 0.0
    %597 = vmatpush1.msra.mxu0 %v520
    %598 = vmatprep.subr.mxu0 0.0
    %599 = vmatpush1.msra.mxu0 %v521
    %600 = vmatprep.subr.mxu0 0.0
    %601 = vmatpush1.msra.mxu0 %v522
    %602 = vmatprep.subr.mxu0 0.0
    %603 = vmatpush1.msra.mxu0 %v523
    %604 = vmatprep.subr.mxu0 0.0
    %605 = vmatpush1.msra.mxu0 %v524
    %606 = vmatprep.subr.mxu0 0.0
    %607 = vmatpush1.msra.mxu0 %v525
    %608 = vmatprep.subr.mxu0 0.0
    %609 = vmatpush1.msra.mxu0 %v526
    %610 = vmatprep.subr.mxu0 0.0
    %611 = vmatpush1.msra.mxu0 %v527
    %612 = vmatprep.subr.mxu0 0.0
    %613 = vmatpush1.msra.mxu0 %v528
    %614 = vmatprep.subr.mxu0 0.0
    %615 = vmatpush1.msra.mxu0 %v529
    %616 = vmatprep.subr.mxu0 0.0
    %617 = vmatpush1.msra.mxu0 %v530
    %618 = vmatprep.subr.mxu0 0.0
    %619 = vmatpush1.msra.mxu0 %v531
    %620 = vmatprep.subr.mxu0 0.0
    %621 = vmatpush1.msra.mxu0 %v532
    %622 = vmatprep.subr.mxu0 0.0
    %623 = vmatpush1.msra.mxu0 %v533
    %624 = vmatprep.subr.mxu0 0.0
    %625 = vmatpush1.msra.mxu0 %v534
    %626 = vmatprep.subr.mxu0 0.0
    %627 = vmatpush1.msra.mxu0 %v535
    %628 = vmatprep.subr.mxu0 0.0
    %629 = vmatpush1.msra.mxu0 %v536
    %630 = vmatprep.subr.mxu0 0.0
    %631 = vmatpush1.msra.mxu0 %v537
    %632 = vmatprep.subr.mxu0 0.0
    %633 = vmatpush1.msra.mxu0 %v538
    %634 = vmatprep.subr.mxu0 0.0
    %635 = vmatpush1.msra.mxu0 %v539
    %636 = vmatprep.subr.mxu0 0.0
    %637 = vmatpush1.msra.mxu0 %v540
    %638 = vmatprep.subr.mxu0 0.0
    %639 = vmatpush1.msra.mxu0 %v541
    %640 = vmatprep.subr.mxu0 0.0
    %641 = vmatpush1.msra.mxu0 %v542
    %642 = vmatprep.subr.mxu0 0.0
    %643 = vmatpush1.msra.mxu0 %v543
    %644 = vmatprep.subr.mxu0 0.0
    %645 = vmatpush1.msra.mxu0 %v544
    %646 = vmatprep.subr.mxu0 0.0
    %647 = vmatpush1.msra.mxu0 %v545
    %648 = vmatprep.subr.mxu0 0.0
    %649 = vmatpush1.msra.mxu0 %v546
    %650 = vmatprep.mubr.f32.mxu0 %v510
    %651 = vmatmul.mubr.f32.gmra.mrb[0].mxu0 %v508
    %v652 = vpop.f32.mrb[0].mxu0
    %v653 = vadd.f32 %v584, %v652
    %v654 = vpop.f32.mrb[0].mxu0
    %655 = vdwg.mxu0
    %656 = vmatprep.subr.mxu0 0.0
    %657 = vmatpush1.msra.mxu0 %v547
    %658 = vmatprep.subr.mxu0 0.0
    %659 = vmatpush1.msra.mxu0 %v548
    %660 = vmatprep.subr.mxu0 0.0
    %661 = vmatpush1.msra.mxu0 %v549
    %662 = vmatprep.subr.mxu0 0.0
    %663 = vmatpush1.msra.mxu0 %v550
    %664 = vmatprep.subr.mxu0 0.0
    %665 = vmatpush1.msra.mxu0 %v551
    %666 = vmatprep.subr.mxu0 0.0
    %667 = vmatpush1.msra.mxu0 %v552
    %668 = vmatprep.subr.mxu0 0.0
    %669 = vmatpush1.msra.mxu0 %v553
    %670 = vmatprep.subr.mxu0 0.0
    %671 = vmatpush1.msra.mxu0 %v554
    %672 = vmatprep.subr.mxu0 0.0
    %673 = vmatpush1.msra.mxu0 %v555
    %674 = vmatprep.subr.mxu0 0.0
    %675 = vmatpush1.msra.mxu0 %v556
    %676 = vmatprep.subr.mxu0 0.0
    %677 = vmatpush1.msra.mxu0 %v557
    %678 = vmatprep.subr.mxu0 0.0
    %679 = vmatpush1.msra.mxu0 %v558
    %680 = vmatprep.subr.mxu0 0.0
    %681 = vmatpush1.msra.mxu0 %v559
    %682 = vmatprep.subr.mxu0 0.0
    %683 = vmatpush1.msra.mxu0 %v560
    %684 = vmatprep.subr.mxu0 0.0
    %685 = vmatpush1.msra.mxu0 %v561
    %686 = vmatprep.subr.mxu0 0.0
    %687 = vmatpush1.msra.mxu0 %v562
    %688 = vmatprep.subr.mxu0 0.0
    %689 = vmatpush1.msra.mxu0 %v563
    %690 = vmatprep.subr.mxu0 0.0
    %691 = vmatpush1.msra.mxu0 %v564
    %692 = vmatprep.subr.mxu0 0.0
    %693 = vmatpush1.msra.mxu0 %v565
    %694 = vmatprep.subr.mxu0 0.0
    %695 = vmatpush1.msra.mxu0 %v566
    %696 = vmatprep.subr.mxu0 0.0
    %697 = vmatpush1.msra.mxu0 %v567
    %698 = vmatprep.subr.mxu0 0.0
    %699 = vmatpush1.msra.mxu0 %v568
    %700 = vmatprep.subr.mxu0 0.0
    %701 = vmatpush1.msra.mxu0 %v569
    %702 = vmatprep.subr.mxu0 0.0
    %703 = vmatpush1.msra.mxu0 %v570
    %704 = vmatprep.subr.mxu0 0.0
    %705 = vmatpush1.msra.mxu0 %v571
    %706 = vmatprep.subr.mxu0 0.0
    %707 = vmatpush1.msra.mxu0 %v572
    %708 = vmatprep.subr.mxu0 0.0
    %709 = vmatpush1.msra.mxu0 %v573
    %710 = vmatprep.subr.mxu0 0.0
    %711 = vmatpush1.msra.mxu0 %v574
    %712 = vmatprep.subr.mxu0 0.0
    %713 = vmatpush1.msra.mxu0 %v575
    %714 = vmatprep.subr.mxu0 0.0
    %715 = vmatpush1.msra.mxu0 %v576
    %716 = vmatprep.subr.mxu0 0.0
    %717 = vmatpush1.msra.mxu0 %v577
    %718 = vmatprep.subr.mxu0 0.0
    %719 = vmatpush1.msra.mxu0 %v578
    %720 = vmatprep.mubr.f32.mxu0 %v514
    %721 = vmatmul.mubr.f32.gmra.mrb[0].mxu0 %v512
    %v722 = vpop.f32.mrb[0].mxu0
    %v723 = vadd.f32 %v653, %v722
    %v724 = vpop.f32.mrb[0].mxu0
    %725 = vdwg.mxu0
    %vm726 = vcmask 343040
    %727 = vst.msk [vmem:[#allocation2] sm:$0xff] %vm726, %v723
    // Predicated region
    $region26: #{tpu_custom_call.1} parent=1 // pred_check
      _
    $region27: #{tpu_custom_call.1} parent=1 // pred_check_branch
      %729 = sbr.rel (0) target = $region29
    $region28: #{tpu_custom_call.1} parent=1 // pred_region
      %s731 = ssub.s32 128, 128
      %732 = vsyncadd [#allocation3], %s731
      %s734 = sshll.u32 [#allocation2], 4
      %s735 = int_to_ptr.vmem [resolvable:$true] %s734
      %737 = dma.vmem_to_hbm [thread:$0]  %s735, 128, %s6, [#allocation3]
    $region29: #{tpu_custom_call.1} parent=1 // pred_fallthru
      _
    // Predicated region
    $region30: #{tpu_custom_call.1} parent=1 // pred_check
      _
    $region31: #{tpu_custom_call.1} parent=1 // pred_check_branch
      %739 = sbr.rel (0) target = $region33
    $region32: #{tpu_custom_call.1} parent=1 // pred_region
      %740 = dma.done [#allocation3], 128
    $region33: #{tpu_custom_call.1} parent=1 // pred_fallthru
      _
    %741 = vsyncpa [#allocation3], 1

</llo_original>
